<compile_context>
chip_gen: v6e
topology: v6e:2x2x1
jax: 0.10.0
libtpu: 0.0.40
codegen_flags: <defaults>
</compile_context>

<pallas_src>
import functools
import math

import jax
import jax.numpy as jnp
from jax import lax
from jax.experimental import pallas as pl
from jax.experimental.pallas import tpu as pltpu


def _fmix32(x):
    """murmur3-style 32-bit avalanche finalizer (wrapping int32 arithmetic)."""
    c1 = jnp.int32(-2048144789)   # 0x85EBCA6B
    c2 = jnp.int32(-1028477387)   # 0xC2B2AE35
    x = x ^ lax.shift_right_logical(x, 16)
    x = x * c1
    x = x ^ lax.shift_right_logical(x, 13)
    x = x * c2
    x = x ^ lax.shift_right_logical(x, 16)
    return x


def _sampler_kernel(seed_ref, out_ref, *, cols):
    # seed_ref: scalar-prefetched (1,) int32 in SMEM; out_ref: (block_rows, cols) VMEM tile.
    golden = jnp.int32(-1640531527)        # 0x9E3779B9
    exp_one = jnp.int32(0x3F800000)        # bit pattern of float32 1.0

    block_rows = out_ref.shape[0]
    row_off = pl.program_id(0) * block_rows

    rows_iota = lax.broadcasted_iota(jnp.int32, out_ref.shape, 0)
    cols_iota = lax.broadcasted_iota(jnp.int32, out_ref.shape, 1)
    # Global linear index -> distinct draws per element, per tile, per core.
    counter = (row_off + rows_iota) * jnp.int32(cols) + cols_iota

    h = _fmix32(counter ^ (seed_ref[0] * golden))
    h = _fmix32(h + golden)

    # Mantissa-stuffing: [1.0, 2.0) - 1.0 == uniform [0.0, 1.0).
    mant = lax.shift_right_logical(h, 9)               # top 23 random bits
    fbits = mant | exp_one
    uniform = lax.bitcast_convert_type(fbits, jnp.float32) - jnp.float32(1.0)

    out_ref[...] = uniform.astype(out_ref.dtype)


class Sampler:
    """JAX/Pallas mirror of the PyTorch `Sampler` base class."""

    def sample(self, seed, shape=(512, 256), dtype=jnp.float32, block_rows=None):
        shape = tuple(int(s) for s in shape)
        if len(shape) == 0:
            rows, cols = 1, 1
        elif len(shape) == 1:
            rows, cols = 1, shape[0]
        else:
            cols = shape[-1]
            rows = int(math.prod(shape[:-1]))

        itemsize = jnp.dtype(dtype).itemsize
        if block_rows is None:
            # ~4 MiB per output tile; double-buffered => ~8 MiB, safe on v5e/v6e/v7x.
            target_bytes = 4 * 1024 * 1024
            block_rows = max(1, target_bytes // max(1, cols * itemsize))
        block_rows = int(min(block_rows, rows))
        if block_rows < rows:
            # Keep tiles sublane-aligned (second-to-last dim multiple of 8).
            block_rows = max(8, (block_rows // 8) * 8)

        grid = (pl.cdiv(rows, block_rows),)
        seed = jnp.asarray(seed, dtype=jnp.int32).reshape((1,))

        kernel = functools.partial(_sampler_kernel, cols=cols)
        out2d = pl.pallas_call(
            kernel,
            out_shape=jax.ShapeDtypeStruct((rows, cols), dtype),
            grid_spec=pltpu.PrefetchScalarGridSpec(
                num_scalar_prefetch=1,          # seed lands in SMEM before the grid runs
                grid=grid,
                in_specs=[],
                out_specs=pl.BlockSpec((block_rows, cols), lambda i, seed: (i, 0)),
            ),
            compiler_params=pltpu.CompilerParams(
                dimension_semantics=("parallel",),      # megacore-shardable on v7x
                vmem_limit_bytes=32 * 1024 * 1024,
            ),
        )(seed)
        return out2d.reshape(shape)

    def forward(self, *args, **kwargs):
        # Exact base-class semantics: forward just delegates to sample.
        return self.sample(*args, **kwargs)

    __call__ = forward


if __name__ == "__main__":
    key = jax.random.PRNGKey(0)
    # Deterministic scalar seed derived from PRNGKey(0).
    seed = jax.random.randint(key, (), 0, 2**31 - 1, dtype=jnp.int32)

    sampler = Sampler()
    # Small demo shape; block_rows=128 -> grid of 4 tiles (exercises the pipeline).
    out = sampler(seed, shape=(512, 256), dtype=jnp.float32, block_rows=128)
    out = jax.block_until_ready(out)

    assert out.shape == (512, 256)
    assert out.dtype == jnp.float32
    assert bool(jnp.all(out >= 0.0)) and bool(jnp.all(out < 1.0))
    # Tiles must be decorrelated (distinct draws per grid step).
    assert not bool(jnp.array_equal(out[:128], out[128:256]))
    # Uniform(0,1) sanity: mean ~0.5, std ~0.289.
    assert 0.4 < float(jnp.mean(out)) < 0.6
    assert 0.2 < float(jnp.std(out)) < 0.4

    print("KERNEL_OK")
</pallas_src>

<mosaic_0001>
module attributes {stable_mosaic.version = 11 : i64} {
  func.func @_sampler_kernel(%arg0: i32, %arg1: memref<1xi32, #tpu.memory_space<smem>>, %arg2: memref<128x256xf32, #tpu.memory_space<vmem>>) attributes {dimension_semantics = [#tpu.dimension_semantics<parallel>], iteration_bounds = array<i64: 4>, scalar_prefetch = 1 : i64, scratch_operands = 0 : i64, tpu.core_type = #tpu.core_type<tc>, window_params = [{transform_indices = @transform_0, window_bounds = array<i64: 128, 256>}]} {
    %c128_i32 = arith.constant 128 : i32
    %0 = arith.muli %arg0, %c128_i32 : i32
    %1 = tpu.iota {dimensions = array<i32: 0>} : vector<128x256xi32>
    %2 = tpu.iota {dimensions = array<i32: 1>} : vector<128x256xi32>
    %3 = vector.broadcast %0 : i32 to vector<128x256xi32>
    %4 = arith.addi %3, %1 : vector<128x256xi32>
    %c256_i32 = arith.constant 256 : i32
    %5 = vector.broadcast %c256_i32 : i32 to vector<128x256xi32>
    %6 = arith.muli %4, %5 : vector<128x256xi32>
    %7 = arith.addi %6, %2 : vector<128x256xi32>
    %c0 = arith.constant 0 : index
    %8 = memref.load %arg1[%c0] : memref<1xi32, #tpu.memory_space<smem>>
    %c-1640531527_i32 = arith.constant -1640531527 : i32
    %9 = arith.muli %8, %c-1640531527_i32 : i32
    %10 = vector.broadcast %9 : i32 to vector<128x256xi32>
    %11 = arith.xori %7, %10 : vector<128x256xi32>
    %c16_i32 = arith.constant 16 : i32
    %12 = vector.broadcast %c16_i32 : i32 to vector<128x256xi32>
    %13 = arith.shrui %11, %12 : vector<128x256xi32>
    %14 = arith.xori %11, %13 : vector<128x256xi32>
    %c-2048144789_i32 = arith.constant -2048144789 : i32
    %15 = vector.broadcast %c-2048144789_i32 : i32 to vector<128x256xi32>
    %16 = arith.muli %14, %15 : vector<128x256xi32>
    %c13_i32 = arith.constant 13 : i32
    %17 = vector.broadcast %c13_i32 : i32 to vector<128x256xi32>
    %18 = arith.shrui %16, %17 : vector<128x256xi32>
    %19 = arith.xori %16, %18 : vector<128x256xi32>
    %c-1028477387_i32 = arith.constant -1028477387 : i32
    %20 = vector.broadcast %c-1028477387_i32 : i32 to vector<128x256xi32>
    %21 = arith.muli %19, %20 : vector<128x256xi32>
    %c16_i32_0 = arith.constant 16 : i32
    %22 = vector.broadcast %c16_i32_0 : i32 to vector<128x256xi32>
    %23 = arith.shrui %21, %22 : vector<128x256xi32>
    %24 = arith.xori %21, %23 : vector<128x256xi32>
    %c-1640531527_i32_1 = arith.constant -1640531527 : i32
    %25 = vector.broadcast %c-1640531527_i32_1 : i32 to vector<128x256xi32>
    %26 = arith.addi %24, %25 : vector<128x256xi32>
    %c16_i32_2 = arith.constant 16 : i32
    %27 = vector.broadcast %c16_i32_2 : i32 to vector<128x256xi32>
    %28 = arith.shrui %26, %27 : vector<128x256xi32>
    %29 = arith.xori %26, %28 : vector<128x256xi32>
    %c-2048144789_i32_3 = arith.constant -2048144789 : i32
    %30 = vector.broadcast %c-2048144789_i32_3 : i32 to vector<128x256xi32>
    %31 = arith.muli %29, %30 : vector<128x256xi32>
    %c13_i32_4 = arith.constant 13 : i32
    %32 = vector.broadcast %c13_i32_4 : i32 to vector<128x256xi32>
    %33 = arith.shrui %31, %32 : vector<128x256xi32>
    %34 = arith.xori %31, %33 : vector<128x256xi32>
    %c-1028477387_i32_5 = arith.constant -1028477387 : i32
    %35 = vector.broadcast %c-1028477387_i32_5 : i32 to vector<128x256xi32>
    %36 = arith.muli %34, %35 : vector<128x256xi32>
    %c16_i32_6 = arith.constant 16 : i32
    %37 = vector.broadcast %c16_i32_6 : i32 to vector<128x256xi32>
    %38 = arith.shrui %36, %37 : vector<128x256xi32>
    %39 = arith.xori %36, %38 : vector<128x256xi32>
    %c9_i32 = arith.constant 9 : i32
    %40 = vector.broadcast %c9_i32 : i32 to vector<128x256xi32>
    %41 = arith.shrui %39, %40 : vector<128x256xi32>
    %c1065353216_i32 = arith.constant 1065353216 : i32
    %42 = vector.broadcast %c1065353216_i32 : i32 to vector<128x256xi32>
    %43 = arith.ori %41, %42 : vector<128x256xi32>
    %44 = tpu.bitcast %43 : vector<128x256xi32> -> vector<128x256xf32>
    %cst = arith.constant 1.000000e+00 : f32
    %45 = vector.broadcast %cst : f32 to vector<128x256xf32>
    %46 = arith.subf %44, %45 : vector<128x256xf32>
    %c0_7 = arith.constant 0 : index
    %c0_8 = arith.constant 0 : index
    %47 = vector.load %arg2[%c0_7, %c0_8] : memref<128x256xf32, #tpu.memory_space<vmem>>, vector<128x256xf32>
    tpu.vector_store %arg2[%c0_7, %c0_8], %46 {strides = array<i32>} : memref<128x256xf32, #tpu.memory_space<vmem>>, vector<128x256xf32>,
    return
  }
  func.func @transform_0(%arg0: i32, %arg1: memref<1xi32, #tpu.memory_space<smem>>) -> (i32, i32) {
    %c0_i32 = arith.constant 0 : i32
    %c0_i32_0 = arith.constant 0 : i32
    return %arg0, %c0_i32 : i32, i32
  }
}

</mosaic_0001>

<llo_original>
// kernel: tpu_custom_call.1
$region0: #{tpu_custom_call.1}
  #allocation0 [shape = 'u32[]', space=smem, size = 0x4, offset = 0x4, fixed_abs, tag = 'smem constant byte address 0x4 - core index']
  #allocation1 [shape = 'u32[144,128]{1,0:T(1,128)}', space=vmem, size = 0x12000, scoped, tag = 'internal scratch']
  #allocation2 [shape = 's32[1]{0}', space=sflag, size = 0x4, scoped, tag = 'scoped memory for tpu_custom_call.1']
  #allocation3 [shape = 's32[1]{0:T(128)S(6)}', space=smem, size = 0x200, scoped, tag = 'prefetched SMEM operand 0']
  %s0 = inlined_call_operand.<no memory space> [shape: s32[1], index: 0, kind: input, shape index: {}]
  %s1 = inlined_call_operand.hbm [shape: f32[512,256], index: 1, kind: output, shape index: {}]
  %s2 = sld [smem:[#allocation0]]
  $region25: #{tpu_custom_call.1} parent=0
    _
  %s4 = ssub.s32 1, %s2
  %s5 = scalar_select 0, %s4, %s2
  %6 = sst [smem:[#allocation3]] %s0
  $region1: #{tpu_custom_call.1} parent=0
    #allocation4 [shape = 'u8[262144]{0}', space=vmem, size = 0x40000, scoped, tag = 'output window, operand 0']
    #allocation5 [shape = 's32[2]{0}', space=sflag, size = 0x8, scoped, tag = 'scoped memory for tpu_custom_call.1']
    %7 = vsyncpa [#allocation5], 0
    %s8 = scalar_lea.sflag [#allocation5], 1
    %9 = vsyncpa %s8, 0
    loop: start=0, step=1, limit=5
    $region2: #{tpu_custom_call.1} parent=1 // loop_pre_header
      _
    $region3: #{tpu_custom_call.1} parent=1 // loop_header
      %s11 = sphi 0, %s15
      %p12 = scmp.ge.s32.totalorder %s11, 5
      %s20 = sphi 0, %s22
      %s23 = sphi 0, %s20
      %s33 = sphi 0, %s23
    $region4: #{tpu_custom_call.1} parent=1 // loop_header_branch
      %14 = sbr.rel (%p12) target = $region8
    $region5: #{tpu_custom_call.1} parent=1 // loop_body
      %s16 = ssub.s32 %s11, 1
      %s17 = sadd.s32 %s11, 1
      %s18 = ssub.s32 %s11, %s17
      %p19 = scmp.eq.s32.totalorder %s18, 0
      %s21 = sadd.s32 %s20, 1
      %s22 = scalar_select %p19, %s20, %s21
      %p24 = pneg %p19
      %p25 = scmp.eq.s32.totalorder %s11, 3
      %p26 = por %p24, %p25
      %p27 = scmp.ne.s32.totalorder %s20, %s23
      %p28 = scmp.eq.s32.totalorder %s11, 0
      %p29 = por %p27, %p28
      %p30 = scmp.ne.s32.totalorder %s20, %s23
      %p31 = scmp.eq.s32.totalorder %s16, 3
      %p32 = por %p30, %p31
      %p34 = scmp.ne.s32.totalorder %s23, %s33
      %p35 = scmp.eq.s32.totalorder %s16, 0
      %p36 = por %p34, %p35
      %p37 = scmp.lt.s32.totalorder %s11, 4
      // Predicated region
      $region9: #{tpu_custom_call.1} parent=5 // pred_check
        %p38 = pneg %p37
      $region10: #{tpu_custom_call.1} parent=5 // pred_check_branch
        %40 = sbr.rel (%p38) target = $region12
      $region11: #{tpu_custom_call.1} parent=5 // pred_region
        %p41 = pneg %p29
        %p42 = pneg %p26
        %s43 = sand.u32 %s20, 1
        %s44 = scalar_lea.sflag [#allocation5], %s43
        %s45 = sand.u32 %s20, 1
        %s46 = smul.addr %s45, 256
        %s47 = scalar_lea.vmem [#allocation4], %s46
        %s48 = smul.u32 16, %s11
        %s49 = smul.u32 %s11, 128
        %v50 = vlaneseq
        %v51 = vshrl.u32 %v50, 7
        %v52 = vadd.s32 %v51, 8
        %v53 = vadd.s32 %v51, 16
        %v54 = vadd.s32 %v51, 24
        %v55 = vadd.s32 %v51, 32
        %v56 = vadd.s32 %v51, 40
        %v57 = vadd.s32 %v51, 48
        %v58 = vadd.s32 %v51, 56
        %v59 = vadd.s32 %v51, 64
        %v60 = vadd.s32 %v51, 72
        %v61 = vadd.s32 %v51, 80
        %v62 = vadd.s32 %v51, 88
        %v63 = vadd.s32 %v51, 96
        %v64 = vadd.s32 %v51, 104
        %v65 = vadd.s32 %v51, 112
        %v66 = vadd.s32 %v51, 120
        %v67 = vlaneseq
        %v68 = vand.u32 %v67, 127
        %v69 = vadd.s32 %v68, 128
        %v70 = vstv %s49
        %v71 = vadd.s32 %v70, %v51
        %v72 = vadd.s32 %v70, %v52
        %v73 = vadd.s32 %v70, %v53
        %v74 = vadd.s32 %v70, %v54
        %v75 = vadd.s32 %v70, %v55
        %v76 = vadd.s32 %v70, %v56
        %v77 = vadd.s32 %v70, %v57
        %v78 = vadd.s32 %v70, %v58
        %v79 = vadd.s32 %v70, %v59
        %v80 = vadd.s32 %v70, %v60
        %v81 = vadd.s32 %v70, %v61
        %v82 = vadd.s32 %v70, %v62
        %v83 = vadd.s32 %v70, %v63
        %v84 = vadd.s32 %v70, %v64
        %v85 = vadd.s32 %v70, %v65
        %v86 = vadd.s32 %v70, %v66
        %v87 = vmul.u32 %v71, 256
        %v88 = vmul.u32 %v72, 256
        %v89 = vmul.u32 %v73, 256
        %v90 = vmul.u32 %v74, 256
        %v91 = vmul.u32 %v75, 256
        %v92 = vmul.u32 %v76, 256
        %v93 = vmul.u32 %v77, 256
        %v94 = vmul.u32 %v78, 256
        %v95 = vmul.u32 %v79, 256
        %v96 = vmul.u32 %v80, 256
        %v97 = vmul.u32 %v81, 256
        %v98 = vmul.u32 %v82, 256
        %v99 = vmul.u32 %v83, 256
        %v100 = vmul.u32 %v84, 256
        %v101 = vmul.u32 %v85, 256
        %v102 = vmul.u32 %v86, 256
        %v103 = vadd.s32 %v87, %v68
        %v104 = vadd.s32 %v87, %v69
        %v105 = vadd.s32 %v88, %v68
        %v106 = vadd.s32 %v88, %v69
        %v107 = vadd.s32 %v89, %v68
        %v108 = vadd.s32 %v89, %v69
        %v109 = vadd.s32 %v90, %v68
        %v110 = vadd.s32 %v90, %v69
        %v111 = vadd.s32 %v91, %v68
        %v112 = vadd.s32 %v91, %v69
        %v113 = vadd.s32 %v92, %v68
        %v114 = vadd.s32 %v92, %v69
        %v115 = vadd.s32 %v93, %v68
        %v116 = vadd.s32 %v93, %v69
        %v117 = vadd.s32 %v94, %v68
        %v118 = vadd.s32 %v94, %v69
        %v119 = vadd.s32 %v95, %v68
        %v120 = vadd.s32 %v95, %v69
        %v121 = vadd.s32 %v96, %v68
        %v122 = vadd.s32 %v96, %v69
        %v123 = vadd.s32 %v97, %v68
        %v124 = vadd.s32 %v97, %v69
        %v125 = vadd.s32 %v98, %v68
        %v126 = vadd.s32 %v98, %v69
        %v127 = vadd.s32 %v99, %v68
        %v128 = vadd.s32 %v99, %v69
        %v129 = vadd.s32 %v100, %v68
        %v130 = vadd.s32 %v100, %v69
        %v131 = vadd.s32 %v101, %v68
        %v132 = vadd.s32 %v101, %v69
        %v133 = vadd.s32 %v102, %v68
        %v134 = vadd.s32 %v102, %v69
        %s135 = sld [smem:[#allocation3]]
        %s136 = smul.u32 %s135, 2654435769
        %v137 = vstv %s136
        %v138 = vxor.u32 %v103, %v137
        %v139 = vxor.u32 %v104, %v137
        %v140 = vxor.u32 %v105, %v137
        %v141 = vxor.u32 %v106, %v137
        %v142 = vxor.u32 %v107, %v137
        %v143 = vxor.u32 %v108, %v137
        %v144 = vxor.u32 %v109, %v137
        %v145 = vxor.u32 %v110, %v137
        %v146 = vxor.u32 %v111, %v137
        %v147 = vxor.u32 %v112, %v137
        %v148 = vxor.u32 %v113, %v137
        %v149 = vxor.u32 %v114, %v137
        %v150 = vxor.u32 %v115, %v137
        %v151 = vxor.u32 %v116, %v137
        %v152 = vxor.u32 %v117, %v137
        %v153 = vxor.u32 %v118, %v137
        %v154 = vxor.u32 %v119, %v137
        %v155 = vxor.u32 %v120, %v137
        %v156 = vxor.u32 %v121, %v137
        %v157 = vxor.u32 %v122, %v137
        %v158 = vxor.u32 %v123, %v137
        %v159 = vxor.u32 %v124, %v137
        %v160 = vxor.u32 %v125, %v137
        %v161 = vxor.u32 %v126, %v137
        %v162 = vxor.u32 %v127, %v137
        %v163 = vxor.u32 %v128, %v137
        %v164 = vxor.u32 %v129, %v137
        %v165 = vxor.u32 %v130, %v137
        %v166 = vxor.u32 %v131, %v137
        %v167 = vxor.u32 %v132, %v137
        %v168 = vxor.u32 %v133, %v137
        %v169 = vxor.u32 %v134, %v137
        %v170 = vshrl.u32 %v138, 16
        %v171 = vshrl.u32 %v139, 16
        %v172 = vshrl.u32 %v140, 16
        %v173 = vshrl.u32 %v141, 16
        %v174 = vshrl.u32 %v142, 16
        %v175 = vshrl.u32 %v143, 16
        %v176 = vshrl.u32 %v144, 16
        %v177 = vshrl.u32 %v145, 16
        %v178 = vshrl.u32 %v146, 16
        %v179 = vshrl.u32 %v147, 16
        %v180 = vshrl.u32 %v148, 16
        %v181 = vshrl.u32 %v149, 16
        %v182 = vshrl.u32 %v150, 16
        %v183 = vshrl.u32 %v151, 16
        %v184 = vshrl.u32 %v152, 16
        %v185 = vshrl.u32 %v153, 16
        %v186 = vshrl.u32 %v154, 16
        %v187 = vshrl.u32 %v155, 16
        %v188 = vshrl.u32 %v156, 16
        %v189 = vshrl.u32 %v157, 16
        %v190 = vshrl.u32 %v158, 16
        %v191 = vshrl.u32 %v159, 16
        %v192 = vshrl.u32 %v160, 16
        %v193 = vshrl.u32 %v161, 16
        %v194 = vshrl.u32 %v162, 16
        %v195 = vshrl.u32 %v163, 16
        %v196 = vshrl.u32 %v164, 16
        %v197 = vshrl.u32 %v165, 16
        %v198 = vshrl.u32 %v166, 16
        %v199 = vshrl.u32 %v167, 16
        %v200 = vshrl.u32 %v168, 16
        %v201 = vshrl.u32 %v169, 16
        %v202 = vxor.u32 %v138, %v170
        %v203 = vxor.u32 %v139, %v171
        %v204 = vxor.u32 %v140, %v172
        %v205 = vxor.u32 %v141, %v173
        %v206 = vxor.u32 %v142, %v174
        %v207 = vxor.u32 %v143, %v175
        %v208 = vxor.u32 %v144, %v176
        %v209 = vxor.u32 %v145, %v177
        %v210 = vxor.u32 %v146, %v178
        %v211 = vxor.u32 %v147, %v179
        %v212 = vxor.u32 %v148, %v180
        %v213 = vxor.u32 %v149, %v181
        %v214 = vxor.u32 %v150, %v182
        %v215 = vxor.u32 %v151, %v183
        %v216 = vxor.u32 %v152, %v184
        %v217 = vxor.u32 %v153, %v185
        %v218 = vxor.u32 %v154, %v186
        %v219 = vxor.u32 %v155, %v187
        %v220 = vxor.u32 %v156, %v188
        %v221 = vxor.u32 %v157, %v189
        %v222 = vxor.u32 %v158, %v190
        %v223 = vxor.u32 %v159, %v191
        %v224 = vxor.u32 %v160, %v192
        %v225 = vxor.u32 %v161, %v193
        %v226 = vxor.u32 %v162, %v194
        %v227 = vxor.u32 %v163, %v195
        %v228 = vxor.u32 %v164, %v196
        %v229 = vxor.u32 %v165, %v197
        %v230 = vxor.u32 %v166, %v198
        %v231 = vxor.u32 %v167, %v199
        %v232 = vxor.u32 %v168, %v200
        %v233 = vxor.u32 %v169, %v201
        %v234 = vmul.u32 %v202, 2246822507
        %v235 = vmul.u32 %v203, 2246822507
        %v236 = vmul.u32 %v204, 2246822507
        %v237 = vmul.u32 %v205, 2246822507
        %v238 = vmul.u32 %v206, 2246822507
        %v239 = vmul.u32 %v207, 2246822507
        %v240 = vmul.u32 %v208, 2246822507
        %v241 = vmul.u32 %v209, 2246822507
        %v242 = vmul.u32 %v210, 2246822507
        %v243 = vmul.u32 %v211, 2246822507
        %v244 = vmul.u32 %v212, 2246822507
        %v245 = vmul.u32 %v213, 2246822507
        %v246 = vmul.u32 %v214, 2246822507
        %v247 = vmul.u32 %v215, 2246822507
        %v248 = vmul.u32 %v216, 2246822507
        %v249 = vmul.u32 %v217, 2246822507
        %v250 = vmul.u32 %v218, 2246822507
        %v251 = vmul.u32 %v219, 2246822507
        %v252 = vmul.u32 %v220, 2246822507
        %v253 = vmul.u32 %v221, 2246822507
        %v254 = vmul.u32 %v222, 2246822507
        %v255 = vmul.u32 %v223, 2246822507
        %v256 = vmul.u32 %v224, 2246822507
        %v257 = vmul.u32 %v225, 2246822507
        %v258 = vmul.u32 %v226, 2246822507
        %v259 = vmul.u32 %v227, 2246822507
        %v260 = vmul.u32 %v228, 2246822507
        %v261 = vmul.u32 %v229, 2246822507
        %v262 = vmul.u32 %v230, 2246822507
        %v263 = vmul.u32 %v231, 2246822507
        %v264 = vmul.u32 %v232, 2246822507
        %v265 = vmul.u32 %v233, 2246822507
        %v266 = vshrl.u32 %v234, 13
        %v267 = vshrl.u32 %v235, 13
        %v268 = vshrl.u32 %v236, 13
        %v269 = vshrl.u32 %v237, 13
        %v270 = vshrl.u32 %v238, 13
        %v271 = vshrl.u32 %v239, 13
        %v272 = vshrl.u32 %v240, 13
        %v273 = vshrl.u32 %v241, 13
        %v274 = vshrl.u32 %v242, 13
        %v275 = vshrl.u32 %v243, 13
        %v276 = vshrl.u32 %v244, 13
        %v277 = vshrl.u32 %v245, 13
        %v278 = vshrl.u32 %v246, 13
        %v279 = vshrl.u32 %v247, 13
        %v280 = vshrl.u32 %v248, 13
        %v281 = vshrl.u32 %v249, 13
        %v282 = vshrl.u32 %v250, 13
        %v283 = vshrl.u32 %v251, 13
        %v284 = vshrl.u32 %v252, 13
        %v285 = vshrl.u32 %v253, 13
        %v286 = vshrl.u32 %v254, 13
        %v287 = vshrl.u32 %v255, 13
        %v288 = vshrl.u32 %v256, 13
        %v289 = vshrl.u32 %v257, 13
        %v290 = vshrl.u32 %v258, 13
        %v291 = vshrl.u32 %v259, 13
        %v292 = vshrl.u32 %v260, 13
        %v293 = vshrl.u32 %v261, 13
        %v294 = vshrl.u32 %v262, 13
        %v295 = vshrl.u32 %v263, 13
        %v296 = vshrl.u32 %v264, 13
        %v297 = vshrl.u32 %v265, 13
        %v298 = vxor.u32 %v234, %v266
        %v299 = vxor.u32 %v235, %v267
        %v300 = vxor.u32 %v236, %v268
        %v301 = vxor.u32 %v237, %v269
        %v302 = vxor.u32 %v238, %v270
        %v303 = vxor.u32 %v239, %v271
        %v304 = vxor.u32 %v240, %v272
        %v305 = vxor.u32 %v241, %v273
        %v306 = vxor.u32 %v242, %v274
        %v307 = vxor.u32 %v243, %v275
        %v308 = vxor.u32 %v244, %v276
        %v309 = vxor.u32 %v245, %v277
        %v310 = vxor.u32 %v246, %v278
        %v311 = vxor.u32 %v247, %v279
        %v312 = vxor.u32 %v248, %v280
        %v313 = vxor.u32 %v249, %v281
        %v314 = vxor.u32 %v250, %v282
        %v315 = vxor.u32 %v251, %v283
        %v316 = vxor.u32 %v252, %v284
        %v317 = vxor.u32 %v253, %v285
        %v318 = vxor.u32 %v254, %v286
        %v319 = vxor.u32 %v255, %v287
        %v320 = vxor.u32 %v256, %v288
        %v321 = vxor.u32 %v257, %v289
        %v322 = vxor.u32 %v258, %v290
        %v323 = vxor.u32 %v259, %v291
        %v324 = vxor.u32 %v260, %v292
        %v325 = vxor.u32 %v261, %v293
        %v326 = vxor.u32 %v262, %v294
        %v327 = vxor.u32 %v263, %v295
        %v328 = vxor.u32 %v264, %v296
        %v329 = vxor.u32 %v265, %v297
        %v330 = vmul.u32 %v298, 3266489909
        %v331 = vmul.u32 %v299, 3266489909
        %v332 = vmul.u32 %v300, 3266489909
        %v333 = vmul.u32 %v301, 3266489909
        %v334 = vmul.u32 %v302, 3266489909
        %v335 = vmul.u32 %v303, 3266489909
        %v336 = vmul.u32 %v304, 3266489909
        %v337 = vmul.u32 %v305, 3266489909
        %v338 = vmul.u32 %v306, 3266489909
        %v339 = vmul.u32 %v307, 3266489909
        %v340 = vmul.u32 %v308, 3266489909
        %v341 = vmul.u32 %v309, 3266489909
        %v342 = vmul.u32 %v310, 3266489909
        %v343 = vmul.u32 %v311, 3266489909
        %v344 = vmul.u32 %v312, 3266489909
        %v345 = vmul.u32 %v313, 3266489909
        %v346 = vmul.u32 %v314, 3266489909
        %v347 = vmul.u32 %v315, 3266489909
        %v348 = vmul.u32 %v316, 3266489909
        %v349 = vmul.u32 %v317, 3266489909
        %v350 = vmul.u32 %v318, 3266489909
        %v351 = vmul.u32 %v319, 3266489909
        %v352 = vmul.u32 %v320, 3266489909
        %v353 = vmul.u32 %v321, 3266489909
        %v354 = vmul.u32 %v322, 3266489909
        %v355 = vmul.u32 %v323, 3266489909
        %v356 = vmul.u32 %v324, 3266489909
        %v357 = vmul.u32 %v325, 3266489909
        %v358 = vmul.u32 %v326, 3266489909
        %v359 = vmul.u32 %v327, 3266489909
        %v360 = vmul.u32 %v328, 3266489909
        %v361 = vmul.u32 %v329, 3266489909
        %v362 = vshrl.u32 %v330, 16
        %v363 = vshrl.u32 %v331, 16
        %v364 = vshrl.u32 %v332, 16
        %v365 = vshrl.u32 %v333, 16
        %v366 = vshrl.u32 %v334, 16
        %v367 = vshrl.u32 %v335, 16
        %v368 = vshrl.u32 %v336, 16
        %v369 = vshrl.u32 %v337, 16
        %v370 = vshrl.u32 %v338, 16
        %v371 = vshrl.u32 %v339, 16
        %v372 = vshrl.u32 %v340, 16
        %v373 = vshrl.u32 %v341, 16
        %v374 = vshrl.u32 %v342, 16
        %v375 = vshrl.u32 %v343, 16
        %v376 = vshrl.u32 %v344, 16
        %v377 = vshrl.u32 %v345, 16
        %v378 = vshrl.u32 %v346, 16
        %v379 = vshrl.u32 %v347, 16
        %v380 = vshrl.u32 %v348, 16
        %v381 = vshrl.u32 %v349, 16
        %v382 = vshrl.u32 %v350, 16
        %v383 = vshrl.u32 %v351, 16
        %v384 = vshrl.u32 %v352, 16
        %v385 = vshrl.u32 %v353, 16
        %v386 = vshrl.u32 %v354, 16
        %v387 = vshrl.u32 %v355, 16
        %v388 = vshrl.u32 %v356, 16
        %v389 = vshrl.u32 %v357, 16
        %v390 = vshrl.u32 %v358, 16
        %v391 = vshrl.u32 %v359, 16
        %v392 = vshrl.u32 %v360, 16
        %v393 = vshrl.u32 %v361, 16
        %v394 = vxor.u32 %v330, %v362
        %v395 = vxor.u32 %v331, %v363
        %v396 = vxor.u32 %v332, %v364
        %v397 = vxor.u32 %v333, %v365
        %v398 = vxor.u32 %v334, %v366
        %v399 = vxor.u32 %v335, %v367
        %v400 = vxor.u32 %v336, %v368
        %v401 = vxor.u32 %v337, %v369
        %v402 = vxor.u32 %v338, %v370
        %v403 = vxor.u32 %v339, %v371
        %v404 = vxor.u32 %v340, %v372
        %v405 = vxor.u32 %v341, %v373
        %v406 = vxor.u32 %v342, %v374
        %v407 = vxor.u32 %v343, %v375
        %v408 = vxor.u32 %v344, %v376
        %v409 = vxor.u32 %v345, %v377
        %v410 = vxor.u32 %v346, %v378
        %v411 = vxor.u32 %v347, %v379
        %v412 = vxor.u32 %v348, %v380
        %v413 = vxor.u32 %v349, %v381
        %v414 = vxor.u32 %v350, %v382
        %v415 = vxor.u32 %v351, %v383
        %v416 = vxor.u32 %v352, %v384
        %v417 = vxor.u32 %v353, %v385
        %v418 = vxor.u32 %v354, %v386
        %v419 = vxor.u32 %v355, %v387
        %v420 = vxor.u32 %v356, %v388
        %v421 = vxor.u32 %v357, %v389
        %v422 = vxor.u32 %v358, %v390
        %v423 = vxor.u32 %v359, %v391
        %v424 = vxor.u32 %v360, %v392
        %v425 = vxor.u32 %v361, %v393
        %v426 = vadd.s32 %v394, 2654435769
        %v427 = vadd.s32 %v395, 2654435769
        %v428 = vadd.s32 %v396, 2654435769
        %v429 = vadd.s32 %v397, 2654435769
        %v430 = vadd.s32 %v398, 2654435769
        %v431 = vadd.s32 %v399, 2654435769
        %v432 = vadd.s32 %v400, 2654435769
        %v433 = vadd.s32 %v401, 2654435769
        %v434 = vadd.s32 %v402, 2654435769
        %v435 = vadd.s32 %v403, 2654435769
        %v436 = vadd.s32 %v404, 2654435769
        %v437 = vadd.s32 %v405, 2654435769
        %v438 = vadd.s32 %v406, 2654435769
        %v439 = vadd.s32 %v407, 2654435769
        %v440 = vadd.s32 %v408, 2654435769
        %v441 = vadd.s32 %v409, 2654435769
        %v442 = vadd.s32 %v410, 2654435769
        %v443 = vadd.s32 %v411, 2654435769
        %v444 = vadd.s32 %v412, 2654435769
        %v445 = vadd.s32 %v413, 2654435769
        %v446 = vadd.s32 %v414, 2654435769
        %v447 = vadd.s32 %v415, 2654435769
        %v448 = vadd.s32 %v416, 2654435769
        %v449 = vadd.s32 %v417, 2654435769
        %v450 = vadd.s32 %v418, 2654435769
        %v451 = vadd.s32 %v419, 2654435769
        %v452 = vadd.s32 %v420, 2654435769
        %v453 = vadd.s32 %v421, 2654435769
        %v454 = vadd.s32 %v422, 2654435769
        %v455 = vadd.s32 %v423, 2654435769
        %v456 = vadd.s32 %v424, 2654435769
        %v457 = vadd.s32 %v425, 2654435769
        %v458 = vshrl.u32 %v426, 16
        %v459 = vshrl.u32 %v427, 16
        %v460 = vshrl.u32 %v428, 16
        %v461 = vshrl.u32 %v429, 16
        %v462 = vshrl.u32 %v430, 16
        %v463 = vshrl.u32 %v431, 16
        %v464 = vshrl.u32 %v432, 16
        %v465 = vshrl.u32 %v433, 16
        %v466 = vshrl.u32 %v434, 16
        %v467 = vshrl.u32 %v435, 16
        %v468 = vshrl.u32 %v436, 16
        %v469 = vshrl.u32 %v437, 16
        %v470 = vshrl.u32 %v438, 16
        %v471 = vshrl.u32 %v439, 16
        %v472 = vshrl.u32 %v440, 16
        %v473 = vshrl.u32 %v441, 16
        %v474 = vshrl.u32 %v442, 16
        %v475 = vshrl.u32 %v443, 16
        %v476 = vshrl.u32 %v444, 16
        %v477 = vshrl.u32 %v445, 16
        %v478 = vshrl.u32 %v446, 16
        %v479 = vshrl.u32 %v447, 16
        %v480 = vshrl.u32 %v448, 16
        %v481 = vshrl.u32 %v449, 16
        %v482 = vshrl.u32 %v450, 16
        %v483 = vshrl.u32 %v451, 16
        %v484 = vshrl.u32 %v452, 16
        %v485 = vshrl.u32 %v453, 16
        %v486 = vshrl.u32 %v454, 16
        %v487 = vshrl.u32 %v455, 16
        %v488 = vshrl.u32 %v456, 16
        %v489 = vshrl.u32 %v457, 16
        %v490 = vxor.u32 %v426, %v458
        %v491 = vxor.u32 %v427, %v459
        %v492 = vxor.u32 %v428, %v460
        %v493 = vxor.u32 %v429, %v461
        %v494 = vxor.u32 %v430, %v462
        %v495 = vxor.u32 %v431, %v463
        %v496 = vxor.u32 %v432, %v464
        %v497 = vxor.u32 %v433, %v465
        %v498 = vxor.u32 %v434, %v466
        %v499 = vxor.u32 %v435, %v467
        %v500 = vxor.u32 %v436, %v468
        %v501 = vxor.u32 %v437, %v469
        %v502 = vxor.u32 %v438, %v470
        %v503 = vxor.u32 %v439, %v471
        %v504 = vxor.u32 %v440, %v472
        %v505 = vxor.u32 %v441, %v473
        %v506 = vxor.u32 %v442, %v474
        %v507 = vxor.u32 %v443, %v475
        %v508 = vxor.u32 %v444, %v476
        %v509 = vxor.u32 %v445, %v477
        %v510 = vxor.u32 %v446, %v478
        %v511 = vxor.u32 %v447, %v479
        %v512 = vxor.u32 %v448, %v480
        %v513 = vxor.u32 %v449, %v481
        %v514 = vxor.u32 %v450, %v482
        %v515 = vxor.u32 %v451, %v483
        %v516 = vxor.u32 %v452, %v484
        %v517 = vxor.u32 %v453, %v485
        %v518 = vxor.u32 %v454, %v486
        %v519 = vxor.u32 %v455, %v487
        %v520 = vxor.u32 %v456, %v488
        %v521 = vxor.u32 %v457, %v489
        %v522 = vmul.u32 %v490, 2246822507
        %v523 = vmul.u32 %v491, 2246822507
        %v524 = vmul.u32 %v492, 2246822507
        %v525 = vmul.u32 %v493, 2246822507
        %v526 = vmul.u32 %v494, 2246822507
        %v527 = vmul.u32 %v495, 2246822507
        %v528 = vmul.u32 %v496, 2246822507
        %v529 = vmul.u32 %v497, 2246822507
        %v530 = vmul.u32 %v498, 2246822507
        %v531 = vmul.u32 %v499, 2246822507
        %v532 = vmul.u32 %v500, 2246822507
        %v533 = vmul.u32 %v501, 2246822507
        %v534 = vmul.u32 %v502, 2246822507
        %v535 = vmul.u32 %v503, 2246822507
        %v536 = vmul.u32 %v504, 2246822507
        %v537 = vmul.u32 %v505, 2246822507
        %v538 = vmul.u32 %v506, 2246822507
        %v539 = vmul.u32 %v507, 2246822507
        %v540 = vmul.u32 %v508, 2246822507
        %v541 = vmul.u32 %v509, 2246822507
        %v542 = vmul.u32 %v510, 2246822507
        %v543 = vmul.u32 %v511, 2246822507
        %v544 = vmul.u32 %v512, 2246822507
        %v545 = vmul.u32 %v513, 2246822507
        %v546 = vmul.u32 %v514, 2246822507
        %v547 = vmul.u32 %v515, 2246822507
        %v548 = vmul.u32 %v516, 2246822507
        %v549 = vmul.u32 %v517, 2246822507
        %v550 = vmul.u32 %v518, 2246822507
        %v551 = vmul.u32 %v519, 2246822507
        %v552 = vmul.u32 %v520, 2246822507
        %v553 = vmul.u32 %v521, 2246822507
        %v554 = vshrl.u32 %v522, 13
        %v555 = vshrl.u32 %v523, 13
        %v556 = vshrl.u32 %v524, 13
        %v557 = vshrl.u32 %v525, 13
        %v558 = vshrl.u32 %v526, 13
        %v559 = vshrl.u32 %v527, 13
        %v560 = vshrl.u32 %v528, 13
        %v561 = vshrl.u32 %v529, 13
        %v562 = vshrl.u32 %v530, 13
        %v563 = vshrl.u32 %v531, 13
        %v564 = vshrl.u32 %v532, 13
        %v565 = vshrl.u32 %v533, 13
        %v566 = vshrl.u32 %v534, 13
        %v567 = vshrl.u32 %v535, 13
        %v568 = vshrl.u32 %v536, 13
        %v569 = vshrl.u32 %v537, 13
        %v570 = vshrl.u32 %v538, 13
        %v571 = vshrl.u32 %v539, 13
        %v572 = vshrl.u32 %v540, 13
        %v573 = vshrl.u32 %v541, 13
        %v574 = vshrl.u32 %v542, 13
        %v575 = vshrl.u32 %v543, 13
        %v576 = vshrl.u32 %v544, 13
        %v577 = vshrl.u32 %v545, 13
        %v578 = vshrl.u32 %v546, 13
        %v579 = vshrl.u32 %v547, 13
        %v580 = vshrl.u32 %v548, 13
        %v581 = vshrl.u32 %v549, 13
        %v582 = vshrl.u32 %v550, 13
        %v583 = vshrl.u32 %v551, 13
        %v584 = vshrl.u32 %v552, 13
        %v585 = vshrl.u32 %v553, 13
        %v586 = vxor.u32 %v522, %v554
        %v587 = vxor.u32 %v523, %v555
        %v588 = vxor.u32 %v524, %v556
        %v589 = vxor.u32 %v525, %v557
        %v590 = vxor.u32 %v526, %v558
        %v591 = vxor.u32 %v527, %v559
        %v592 = vxor.u32 %v528, %v560
        %v593 = vxor.u32 %v529, %v561
        %v594 = vxor.u32 %v530, %v562
        %v595 = vxor.u32 %v531, %v563
        %v596 = vxor.u32 %v532, %v564
        %v597 = vxor.u32 %v533, %v565
        %v598 = vxor.u32 %v534, %v566
        %v599 = vxor.u32 %v535, %v567
        %v600 = vxor.u32 %v536, %v568
        %v601 = vxor.u32 %v537, %v569
        %v602 = vxor.u32 %v538, %v570
        %v603 = vxor.u32 %v539, %v571
        %v604 = vxor.u32 %v540, %v572
        %v605 = vxor.u32 %v541, %v573
        %v606 = vxor.u32 %v542, %v574
        %v607 = vxor.u32 %v543, %v575
        %v608 = vxor.u32 %v544, %v576
        %v609 = vxor.u32 %v545, %v577
        %v610 = vxor.u32 %v546, %v578
        %v611 = vxor.u32 %v547, %v579
        %v612 = vxor.u32 %v548, %v580
        %v613 = vxor.u32 %v549, %v581
        %v614 = vxor.u32 %v550, %v582
        %v615 = vxor.u32 %v551, %v583
        %v616 = vxor.u32 %v552, %v584
        %v617 = vxor.u32 %v553, %v585
        %v618 = vmul.u32 %v586, 3266489909
        %v619 = vmul.u32 %v587, 3266489909
        %v620 = vmul.u32 %v588, 3266489909
        %v621 = vmul.u32 %v589, 3266489909
        %v622 = vmul.u32 %v590, 3266489909
        %v623 = vmul.u32 %v591, 3266489909
        %v624 = vmul.u32 %v592, 3266489909
        %v625 = vmul.u32 %v593, 3266489909
        %v626 = vmul.u32 %v594, 3266489909
        %v627 = vmul.u32 %v595, 3266489909
        %v628 = vmul.u32 %v596, 3266489909
        %v629 = vmul.u32 %v597, 3266489909
        %v630 = vmul.u32 %v598, 3266489909
        %v631 = vmul.u32 %v599, 3266489909
        %v632 = vmul.u32 %v600, 3266489909
        %v633 = vmul.u32 %v601, 3266489909
        %v634 = vmul.u32 %v602, 3266489909
        %v635 = vmul.u32 %v603, 3266489909
        %v636 = vmul.u32 %v604, 3266489909
        %v637 = vmul.u32 %v605, 3266489909
        %v638 = vmul.u32 %v606, 3266489909
        %v639 = vmul.u32 %v607, 3266489909
        %v640 = vmul.u32 %v608, 3266489909
        %v641 = vmul.u32 %v609, 3266489909
        %v642 = vmul.u32 %v610, 3266489909
        %v643 = vmul.u32 %v611, 3266489909
        %v644 = vmul.u32 %v612, 3266489909
        %v645 = vmul.u32 %v613, 3266489909
        %v646 = vmul.u32 %v614, 3266489909
        %v647 = vmul.u32 %v615, 3266489909
        %v648 = vmul.u32 %v616, 3266489909
        %v649 = vmul.u32 %v617, 3266489909
        %v650 = vshrl.u32 %v618, 16
        %v651 = vshrl.u32 %v619, 16
        %v652 = vshrl.u32 %v620, 16
        %v653 = vshrl.u32 %v621, 16
        %v654 = vshrl.u32 %v622, 16
        %v655 = vshrl.u32 %v623, 16
        %v656 = vshrl.u32 %v624, 16
        %v657 = vshrl.u32 %v625, 16
        %v658 = vshrl.u32 %v626, 16
        %v659 = vshrl.u32 %v627, 16
        %v660 = vshrl.u32 %v628, 16
        %v661 = vshrl.u32 %v629, 16
        %v662 = vshrl.u32 %v630, 16
        %v663 = vshrl.u32 %v631, 16
        %v664 = vshrl.u32 %v632, 16
        %v665 = vshrl.u32 %v633, 16
        %v666 = vshrl.u32 %v634, 16
        %v667 = vshrl.u32 %v635, 16
        %v668 = vshrl.u32 %v636, 16
        %v669 = vshrl.u32 %v637, 16
        %v670 = vshrl.u32 %v638, 16
        %v671 = vshrl.u32 %v639, 16
        %v672 = vshrl.u32 %v640, 16
        %v673 = vshrl.u32 %v641, 16
        %v674 = vshrl.u32 %v642, 16
        %v675 = vshrl.u32 %v643, 16
        %v676 = vshrl.u32 %v644, 16
        %v677 = vshrl.u32 %v645, 16
        %v678 = vshrl.u32 %v646, 16
        %v679 = vshrl.u32 %v647, 16
        %v680 = vshrl.u32 %v648, 16
        %v681 = vshrl.u32 %v649, 16
        %v682 = vxor.u32 %v618, %v650
        %v683 = vxor.u32 %v619, %v651
        %v684 = vxor.u32 %v620, %v652
        %v685 = vxor.u32 %v621, %v653
        %v686 = vxor.u32 %v622, %v654
        %v687 = vxor.u32 %v623, %v655
        %v688 = vxor.u32 %v624, %v656
        %v689 = vxor.u32 %v625, %v657
        %v690 = vxor.u32 %v626, %v658
        %v691 = vxor.u32 %v627, %v659
        %v692 = vxor.u32 %v628, %v660
        %v693 = vxor.u32 %v629, %v661
        %v694 = vxor.u32 %v630, %v662
        %v695 = vxor.u32 %v631, %v663
        %v696 = vxor.u32 %v632, %v664
        %v697 = vxor.u32 %v633, %v665
        %v698 = vxor.u32 %v634, %v666
        %v699 = vxor.u32 %v635, %v667
        %v700 = vxor.u32 %v636, %v668
        %v701 = vxor.u32 %v637, %v669
        %v702 = vxor.u32 %v638, %v670
        %v703 = vxor.u32 %v639, %v671
        %v704 = vxor.u32 %v640, %v672
        %v705 = vxor.u32 %v641, %v673
        %v706 = vxor.u32 %v642, %v674
        %v707 = vxor.u32 %v643, %v675
        %v708 = vxor.u32 %v644, %v676
        %v709 = vxor.u32 %v645, %v677
        %v710 = vxor.u32 %v646, %v678
        %v711 = vxor.u32 %v647, %v679
        %v712 = vxor.u32 %v648, %v680
        %v713 = vxor.u32 %v649, %v681
        %v714 = vshrl.u32 %v682, 9
        %v715 = vshrl.u32 %v683, 9
        %v716 = vshrl.u32 %v684, 9
        %v717 = vshrl.u32 %v685, 9
        %v718 = vshrl.u32 %v686, 9
        %v719 = vshrl.u32 %v687, 9
        %v720 = vshrl.u32 %v688, 9
        %v721 = vshrl.u32 %v689, 9
        %v722 = vshrl.u32 %v690, 9
        %v723 = vshrl.u32 %v691, 9
        %v724 = vshrl.u32 %v692, 9
        %v725 = vshrl.u32 %v693, 9
        %v726 = vshrl.u32 %v694, 9
        %v727 = vshrl.u32 %v695, 9
        %v728 = vshrl.u32 %v696, 9
        %v729 = vshrl.u32 %v697, 9
        %v730 = vshrl.u32 %v698, 9
        %v731 = vshrl.u32 %v699, 9
        %v732 = vshrl.u32 %v700, 9
        %v733 = vshrl.u32 %v701, 9
        %v734 = vshrl.u32 %v702, 9
        %v735 = vshrl.u32 %v703, 9
        %v736 = vshrl.u32 %v704, 9
        %v737 = vshrl.u32 %v705, 9
        %v738 = vshrl.u32 %v706, 9
        %v739 = vshrl.u32 %v707, 9
        %v740 = vshrl.u32 %v708, 9
        %v741 = vshrl.u32 %v709, 9
        %v742 = vshrl.u32 %v710, 9
        %v743 = vshrl.u32 %v711, 9
        %v744 = vshrl.u32 %v712, 9
        %v745 = vshrl.u32 %v713, 9
        %v746 = vor.u32 %v714, 1065353216
        %v747 = vor.u32 %v715, 1065353216
        %v748 = vor.u32 %v716, 1065353216
        %v749 = vor.u32 %v717, 1065353216
        %v750 = vor.u32 %v718, 1065353216
        %v751 = vor.u32 %v719, 1065353216
        %v752 = vor.u32 %v720, 1065353216
        %v753 = vor.u32 %v721, 1065353216
        %v754 = vor.u32 %v722, 1065353216
        %v755 = vor.u32 %v723, 1065353216
        %v756 = vor.u32 %v724, 1065353216
        %v757 = vor.u32 %v725, 1065353216
        %v758 = vor.u32 %v726, 1065353216
        %v759 = vor.u32 %v727, 1065353216
        %v760 = vor.u32 %v728, 1065353216
        %v761 = vor.u32 %v729, 1065353216
        %v762 = vor.u32 %v730, 1065353216
        %v763 = vor.u32 %v731, 1065353216
        %v764 = vor.u32 %v732, 1065353216
        %v765 = vor.u32 %v733, 1065353216
        %v766 = vor.u32 %v734, 1065353216
        %v767 = vor.u32 %v735, 1065353216
        %v768 = vor.u32 %v736, 1065353216
        %v769 = vor.u32 %v737, 1065353216
        %v770 = vor.u32 %v738, 1065353216
        %v771 = vor.u32 %v739, 1065353216
        %v772 = vor.u32 %v740, 1065353216
        %v773 = vor.u32 %v741, 1065353216
        %v774 = vor.u32 %v742, 1065353216
        %v775 = vor.u32 %v743, 1065353216
        %v776 = vor.u32 %v744, 1065353216
        %v777 = vor.u32 %v745, 1065353216
        %v810 = vsub.f32 %v746, 1.0
        %v811 = vsub.f32 %v747, 1.0
        %v812 = vsub.f32 %v748, 1.0
        %v813 = vsub.f32 %v749, 1.0
        %v814 = vsub.f32 %v750, 1.0
        %v815 = vsub.f32 %v751, 1.0
        %v816 = vsub.f32 %v752, 1.0
        %v817 = vsub.f32 %v753, 1.0
        %v818 = vsub.f32 %v754, 1.0
        %v819 = vsub.f32 %v755, 1.0
        %v820 = vsub.f32 %v756, 1.0
        %v821 = vsub.f32 %v757, 1.0
        %v822 = vsub.f32 %v758, 1.0
        %v823 = vsub.f32 %v759, 1.0
        %v824 = vsub.f32 %v760, 1.0
        %v825 = vsub.f32 %v761, 1.0
        %v826 = vsub.f32 %v762, 1.0
        %v827 = vsub.f32 %v763, 1.0
        %v828 = vsub.f32 %v764, 1.0
        %v829 = vsub.f32 %v765, 1.0
        %v830 = vsub.f32 %v766, 1.0
        %v831 = vsub.f32 %v767, 1.0
        %v832 = vsub.f32 %v768, 1.0
        %v833 = vsub.f32 %v769, 1.0
        %v834 = vsub.f32 %v770, 1.0
        %v835 = vsub.f32 %v771, 1.0
        %v836 = vsub.f32 %v772, 1.0
        %v837 = vsub.f32 %v773, 1.0
        %v838 = vsub.f32 %v774, 1.0
        %v839 = vsub.f32 %v775, 1.0
        %v840 = vsub.f32 %v776, 1.0
        %v841 = vsub.f32 %v777, 1.0
        %842 = vst [vmem:[%s47] sm:$0xff] %v810
        %843 = vst [vmem:[%s47 + $0x8] sm:$0xff] %v811
        %844 = vst [vmem:[%s47 + $0x10] sm:$0xff] %v812
        %845 = vst [vmem:[%s47 + $0x18] sm:$0xff] %v813
        %846 = vst [vmem:[%s47 + $0x20] sm:$0xff] %v814
        %847 = vst [vmem:[%s47 + $0x28] sm:$0xff] %v815
        %848 = vst [vmem:[%s47 + $0x30] sm:$0xff] %v816
        %849 = vst [vmem:[%s47 + $0x38] sm:$0xff] %v817
        %850 = vst [vmem:[%s47 + $0x40] sm:$0xff] %v818
        %851 = vst [vmem:[%s47 + $0x48] sm:$0xff] %v819
        %852 = vst [vmem:[%s47 + $0x50] sm:$0xff] %v820
        %853 = vst [vmem:[%s47 + $0x58] sm:$0xff] %v821
        %854 = vst [vmem:[%s47 + $0x60] sm:$0xff] %v822
        %855 = vst [vmem:[%s47 + $0x68] sm:$0xff] %v823
        %856 = vst [vmem:[%s47 + $0x70] sm:$0xff] %v824
        %857 = vst [vmem:[%s47 + $0x78] sm:$0xff] %v825
        %858 = vst [vmem:[%s47 + $0x80] sm:$0xff] %v826
        %859 = vst [vmem:[%s47 + $0x88] sm:$0xff] %v827
        %860 = vst [vmem:[%s47 + $0x90] sm:$0xff] %v828
        %861 = vst [vmem:[%s47 + $0x98] sm:$0xff] %v829
        %862 = vst [vmem:[%s47 + $0xa0] sm:$0xff] %v830
        %863 = vst [vmem:[%s47 + $0xa8] sm:$0xff] %v831
        %864 = vst [vmem:[%s47 + $0xb0] sm:$0xff] %v832
        %865 = vst [vmem:[%s47 + $0xb8] sm:$0xff] %v833
        %866 = vst [vmem:[%s47 + $0xc0] sm:$0xff] %v834
        %867 = vst [vmem:[%s47 + $0xc8] sm:$0xff] %v835
        %868 = vst [vmem:[%s47 + $0xd0] sm:$0xff] %v836
        %869 = vst [vmem:[%s47 + $0xd8] sm:$0xff] %v837
        %870 = vst [vmem:[%s47 + $0xe0] sm:$0xff] %v838
        %871 = vst [vmem:[%s47 + $0xe8] sm:$0xff] %v839
        %872 = vst [vmem:[%s47 + $0xf0] sm:$0xff] %v840
        %873 = vst [vmem:[%s47 + $0xf8] sm:$0xff] %v841
        %s874 = sand.u32 %s20, 1
        %s875 = scalar_lea.sflag [#allocation5], %s874
        %s876 = sand.u32 %s20, 1
        %s877 = smul.addr %s876, 256
        %s878 = scalar_lea.vmem [#allocation4], %s877
        // Predicated region
        $region13: #{tpu_custom_call.1} parent=11 // pred_check
          %p879 = pneg %p26
        $region14: #{tpu_custom_call.1} parent=11 // pred_check_branch
          %881 = sbr.rel (%p879) target = $region16
        $region15: #{tpu_custom_call.1} parent=11 // pred_region
          %s882 = smul.u32 16, %s11
          %s884 = ssub.s32 4096, 4096
          %885 = vsyncadd %s875, %s884
          %s886 = smul.addr %s882, 2
          %s887 = smul.addr %s886, 128
          %s888 = scalar_lea.hbm %s1, %s887
          %s889 = sshll.u32 %s878, 4
          %s890 = int_to_ptr.vmem [resolvable:$true] %s889
          %895 = dma.vmem_to_hbm [thread:$0]  %s890, 4096, %s888, %s875, 256, 256, 16
        $region16: #{tpu_custom_call.1} parent=11 // pred_fallthru
          _
      $region12: #{tpu_custom_call.1} parent=5 // pred_fallthru
        _
      %p896 = scmp.le.s32.totalorder 1, %s11
      // Predicated region
      $region17: #{tpu_custom_call.1} parent=5 // pred_check
        %p897 = pneg %p896
      $region18: #{tpu_custom_call.1} parent=5 // pred_check_branch
        %899 = sbr.rel (%p897) target = $region20
      $region19: #{tpu_custom_call.1} parent=5 // pred_region
        %s900 = ssub.s32 %s11, 1
        // Predicated region
        $region21: #{tpu_custom_call.1} parent=19 // pred_check
          %p901 = pneg %p32
        $region22: #{tpu_custom_call.1} parent=19 // pred_check_branch
          %903 = sbr.rel (%p901) target = $region24
        $region23: #{tpu_custom_call.1} parent=19 // pred_region
          %s904 = sand.u32 %s23, 1
          %s905 = scalar_lea.sflag [#allocation5], %s904
          %s906 = sand.u32 %s23, 1
          %s907 = smul.addr %s906, 256
          %s908 = scalar_lea.vmem [#allocation4], %s907
          %909 = dma.done %s905, 4096
        $region24: #{tpu_custom_call.1} parent=19 // pred_fallthru
          _
      $region20: #{tpu_custom_call.1} parent=5 // pred_fallthru
        _
    $region6: #{tpu_custom_call.1} parent=1 // loop_footer
      %s15 = sadd.s32 1, %s11
    $region7: #{tpu_custom_call.1} parent=1 // loop_footer_branch
      %10 = sbr.rel target = $region3
    $region8: #{tpu_custom_call.1} parent=1 // loop_exit
      _
    %910 = vsyncpa [#allocation5], 1
    %s911 = scalar_lea.sflag [#allocation5], 1
    %912 = vsyncpa %s911, 1

</llo_original>
